<compile_context>
chip_gen: v6e
topology: v6e:2x2x1
jax: 0.10.0
libtpu: 0.0.40
codegen_flags: <defaults>
</compile_context>

<pallas_src>
import functools

import jax
import jax.numpy as jnp
from jax.experimental import pallas as pl
from jax.experimental.pallas import tpu as pltpu


# ----------------------------------------------------------------------------
# Fused kernel: per batch tile of Bt examples
#   Code2Vec:  h    = tanh(ctx @ W_fc)                         (Bt*C, K)
#              att  = softmax(sum(h * a, lane), contexts)      (Bt, C)
#              cv   = sum_c att * h                            (Bt, K)
#              lvec = cv @ W_fc2^T + b_fc2                     (Bt, E)
#   DocEnc:    hid  = sum(nl, seq) / L                         (Bt, E)
#              ha   = nl @ W_b                                 (Bt*L, E)
#              att  = softmax(sum(ha * hid, lane), seq)        (Bt, L)
#              rvec = sum_l att * nl                           (Bt, E)
#   Output:    out  = [lvec | rvec | 0]                        (Bt, 128-padded)
# ----------------------------------------------------------------------------
def _fused_kernel(ctx_ref, wfc_ref, a_ref, wfc2_ref, b2_ref, nl_ref, wb_ref,
                  out_ref, *, C_valid, L_valid):
    Bt, C_pad, K3 = ctx_ref.shape
    K = wfc_ref.shape[1]
    L_pad, E = nl_ref.shape[1], nl_ref.shape[2]

    # ------------------- Code2Vec encoder -------------------
    # Single packed matmul: (Bt*C, 3E) x (3E, K), f32 accumulation on MXU.
    ctx = ctx_ref[...].reshape(Bt * C_pad, K3)      # C_pad is sublane-aligned
    h = jnp.tanh(jnp.dot(ctx, wfc_ref[...],
                         preferred_element_type=jnp.float32))     # (Bt*C, K)
    h3 = h.reshape(Bt, C_pad, K)

    # Lane-dense attention scores: contexts on the lane axis of (Bt, C).
    scores = jnp.sum(h3 * a_ref[...].astype(jnp.float32), axis=2)  # (Bt, C)
    cpos = jax.lax.broadcasted_iota(jnp.int32, (Bt, C_pad), 1)
    scores = jnp.where(cpos < C_valid, scores, -1e30)
    m = jnp.max(scores, axis=1, keepdims=True)
    ex = jnp.exp(scores - m)
    att = ex / jnp.sum(ex, axis=1, keepdims=True)                  # (Bt, C) f32

    # Attention-weighted context sum: VPU broadcast-multiply + sublane reduce
    # (keeps the MXU free; avoids Bt serialized 1-row matmuls at large Bt).
    cv = jnp.sum(h3 * att[:, :, None], axis=1)                     # (Bt, K) f32
    lvec = (jnp.dot(cv.astype(wfc2_ref.dtype), wfc2_ref[...],
                    preferred_element_type=jnp.float32)
            + b2_ref[...].astype(jnp.float32))                     # (Bt, E)

    # ------------------- Document encoder -------------------
    emb = nl_ref[...]                                              # (Bt, L, E)
    embf = emb.astype(jnp.float32)
    hidden = jnp.sum(embf, axis=1) / L_valid                       # (Bt, E) f32
    ha = jnp.dot(emb.reshape(Bt * L_pad, E), wb_ref[...],
                 preferred_element_type=jnp.float32).reshape(Bt, L_pad, E)
    dsc = jnp.sum(ha * hidden[:, None, :], axis=2)                 # (Bt, L) f32
    lpos = jax.lax.broadcasted_iota(jnp.int32, (Bt, L_pad), 1)
    dsc = jnp.where(lpos < L_valid, dsc, -1e30)
    dm = jnp.max(dsc, axis=1, keepdims=True)
    de = jnp.exp(dsc - dm)
    datt = de / jnp.sum(de, axis=1, keepdims=True)                 # (Bt, L) f32
    # datt stays f32 (only emb may be bf16) -> better accuracy in low precision
    rvec = jnp.sum(embf * datt[:, :, None], axis=1)                # (Bt, E) f32

    # ------------------- lane-dense packed output -----------
    packed = jnp.concatenate([lvec, rvec], axis=1)                 # (Bt, 2E)
    pad_w = out_ref.shape[1] - 2 * E
    if pad_w > 0:
        packed = jnp.concatenate(
            [packed, jnp.zeros((Bt, pad_w), jnp.float32)], axis=1)
    out_ref[...] = packed.astype(out_ref.dtype)                    # (Bt, 128k)


def fused_forward(ctx, w_fc_t, a_row, w_fc2_t, b_fc2, nl_emb, w_b, *,
                  block_batch, c_valid, l_valid, out_width, vmem_limit_bytes):
    Bp, C_pad, K3 = ctx.shape
    K = w_fc_t.shape[1]
    L_pad, E = nl_emb.shape[1], nl_emb.shape[2]
    Bt = block_batch
    assert Bp % Bt == 0
    assert Bt == Bp or Bt % 8 == 0   # out block second-to-last dim constraint
    rep2 = lambda b: (0, 0)
    kernel = functools.partial(_fused_kernel, C_valid=c_valid, L_valid=l_valid)

    return pl.pallas_call(
        kernel,
        out_shape=jax.ShapeDtypeStruct((Bp, out_width), jnp.float32),
        grid=(Bp // Bt,),
        in_specs=[
            pl.BlockSpec((Bt, C_pad, K3), lambda b: (b, 0, 0)),   # packed ctx
            pl.BlockSpec((K3, K), rep2),                          # W_fc^T
            pl.BlockSpec((1, K), rep2),                           # a (row)
            pl.BlockSpec((K, E), rep2),                           # W_fc2^T
            pl.BlockSpec((1, E), rep2),                           # b_fc2
            pl.BlockSpec((Bt, L_pad, E), lambda b: (b, 0, 0)),    # nl_emb
            pl.BlockSpec((E, E), rep2),                           # W_b
        ],
        out_specs=pl.BlockSpec((Bt, out_width), lambda b: (b, 0)),
        compiler_params=pltpu.CompilerParams(
            dimension_semantics=("parallel",),   # batch grid shards megacore
            vmem_limit_bytes=vmem_limit_bytes),
    )(ctx, w_fc_t, a_row, w_fc2_t, b_fc2, nl_emb, w_b)


# ----------------------------------------------------------------------------
# Wrapper: gathers + padding + parameter prep in JAX, compute in Pallas.
# ----------------------------------------------------------------------------
def _round_up(x, m):
    return (x + m - 1) // m * m


def _sublane_pack(dtype):
    return 8 * 4 // jnp.dtype(dtype).itemsize   # 8 for f32, 16 for bf16


def _per_example_vmem_bytes(C_pad, L_pad, E, in_bytes):
    K = 3 * E
    lane = 128
    return (2 * C_pad * 3 * E * in_bytes           # ctx block, double-buffered
            + 2 * L_pad * E * in_bytes             # nl block, double-buffered
            + 2 * C_pad * _round_up(K, lane) * 4   # pre/h f32 intermediates
            + 2 * L_pad * _round_up(E, lane) * 4   # ha + weighted f32 interm.
            + 2 * _round_up(2 * E, lane) * 4)      # packed output block


def _choose_block_batch(B, C_pad, L_pad, E, in_bytes):
    # VMEM-budgeted batch tile: ~24 MiB of blocks leaves headroom on every
    # generation (scoped defaults 16/32 MiB on v5e/v6e; 64 MiB physical/core
    # on v7x), while amortizing the ~0.35us/step pipeline overhead.
    budget = 24 << 20
    per_ex = _per_example_vmem_bytes(C_pad, L_pad, E, in_bytes)
    bt = int(max(1, min(B, budget // per_ex, 1024)))
    if bt >= 8:
        bt = (bt // 8) * 8
    # Keep >=2 grid steps when the batch allows so both TensorCores get work.
    if B > 8 and 2 * bt > B:
        bt = max(8, _round_up((B + 1) // 2, 8))
    return bt


def code_search_forward(params, starts, paths, ends, masks, encodes, max_len,
                        *, block_batch=None, compute_dtype=jnp.float32):
    del masks  # masks are accepted but never used in the PyTorch forward
    tok = params["token_embedding"]          # (vocab+1, E)
    path_tab = params["path_embedding"]      # (paths_dim+1, E)
    B, C = starts.shape
    L = encodes.shape[1]
    E = tok.shape[1]
    K = params["w_fc_t"].shape[1]
    assert K == 3 * E, "code_vector_size must equal 3*embedding_dim"

    pack = _sublane_pack(compute_dtype)
    C_pad = _round_up(C, pack)               # sublane-aligned context count
    L_pad = _round_up(L, pack)               # sublane-aligned doc length
    out_width = _round_up(2 * E, 128)        # lane-dense packed output slab
    in_bytes = jnp.dtype(compute_dtype).itemsize

    if block_batch is None:
        block_batch = _choose_block_batch(B, C_pad, L_pad, E, in_bytes)
    Bt = block_batch
    Bp = _round_up(B, Bt)

    # Embedding gathers + packed context concat (kept in JAX; XLA gather).
    # TODO(synk): move the gathers in-kernel (jnp.take on VMEM-resident
    #             tables + scalar-prefetched indices) when the embedding
    #             tables fit the per-core VMEM budget, removing the HBM
    #             round-trip for the gathered inputs.
    ctx = jnp.concatenate(
        [tok[starts + 1], path_tab[paths], tok[ends + 1]],
        axis=2).astype(compute_dtype)                         # (B, C, 3E)
    nl_emb = tok[encodes + 1].astype(compute_dtype)           # (B, L, E)
    # dropout(p=0.25) is identity in eval mode.

    # Zero-pad batch / contexts / seq-len up to tile- and sublane-aligned
    # sizes; padded positions are masked to -inf inside the kernel and the
    # doc mean divides by the true L, so numerics match the unpadded math.
    ctx = jnp.pad(ctx, ((0, Bp - B), (0, C_pad - C), (0, 0)))
    nl_emb = jnp.pad(nl_emb, ((0, Bp - B), (0, L_pad - L), (0, 0)))

    w_fc_t = params["w_fc_t"].astype(compute_dtype)           # (3E, K)
    a_row = params["a"].T.astype(jnp.float32)                 # (1, K)
    w_fc2_t = params["w_fc2_t"].astype(compute_dtype)         # (K, E)
    b_fc2 = params["b_fc2"].astype(jnp.float32)               # (1, E)
    w_b = params["w_b"].astype(compute_dtype)                 # (E, E)

    per_block = _per_example_vmem_bytes(C_pad, L_pad, E, in_bytes) * Bt
    weight_bytes = (2 * (w_fc_t.size + w_fc2_t.size + w_b.size) * in_bytes
                    + 2 * (a_row.size + b_fc2.size) * 4)
    vmem_limit = int(min(48 << 20,
                         max(16 << 20, per_block + weight_bytes + (4 << 20))))

    out = fused_forward(ctx, w_fc_t, a_row, w_fc2_t, b_fc2, nl_emb, w_b,
                        block_batch=Bt, c_valid=C, l_valid=L,
                        out_width=out_width, vmem_limit_bytes=vmem_limit)
    return out[:B, :E], out[:B, E:2 * E]


# ----------------------------------------------------------------------------
# Pure-JAX reference (mirrors the PyTorch math) for a correctness check.
# ----------------------------------------------------------------------------
def reference_forward(params, starts, paths, ends, masks, encodes, max_len):
    tok = params["token_embedding"]
    path_emb = params["path_embedding"]
    ctx = jnp.concatenate(
        [tok[starts + 1], path_emb[paths], tok[ends + 1]], axis=2)
    h = jnp.tanh(jnp.einsum("bck,kj->bcj", ctx, params["w_fc_t"]))
    score = jnp.einsum("bck,kx->bcx", h, params["a"])
    att = jax.nn.softmax(score, axis=1)
    cv = jnp.sum(h * att, axis=1)
    lvec = cv @ params["w_fc2_t"] + params["b_fc2"][0]

    nl_emb = tok[encodes + 1]
    hidden = jnp.mean(nl_emb, axis=1)                    # (B, E)
    ha = jnp.einsum("ble,ef->blf", nl_emb, params["w_b"])
    sc = jnp.einsum("blf,bf->bl", ha, hidden)
    at = jax.nn.softmax(sc, axis=1)
    rvec = jnp.einsum("bl,ble->be", at, nl_emb)
    return lvec, rvec


if __name__ == "__main__":
    # Small, shape-consistent configuration.
    B = 2                # batch
    C = 16               # number of path-contexts per example
    L = 20               # doc max_len (matches forward(x2, 20))
    E = 32               # embedding_dim
    K = 3 * E            # code_vector_size must equal 3*embedding_dim
    vocab_size = 50
    paths_dim = 30

    root = jax.random.PRNGKey(0)
    ks = jax.random.split(root, 12)

    # --- deterministic parameter init (shapes from module __init__) ---
    tok_emb = jax.random.uniform(ks[0], (vocab_size + 1, E),
                                 minval=-0.1, maxval=0.1, dtype=jnp.float32)
    tok_emb = tok_emb.at[0].set(0.0)                      # init_weights
    path_emb = jax.random.normal(ks[1], (paths_dim + 1, E), dtype=jnp.float32)
    path_emb = path_emb.at[0].set(0.0)                    # padding_idx=0

    lim_fc = 1.0 / jnp.sqrt(K)
    w_fc = jax.random.uniform(ks[2], (K, K), minval=-lim_fc, maxval=lim_fc,
                              dtype=jnp.float32)          # Linear(K, K) weight
    a_vec = jax.random.uniform(ks[3], (K, 1), dtype=jnp.float32)  # uniform_()
    w_fc2 = jax.random.uniform(ks[4], (E, K), minval=-lim_fc, maxval=lim_fc,
                               dtype=jnp.float32)         # Linear(K, E) weight
    b_fc2 = jax.random.uniform(ks[5], (E,), minval=-lim_fc, maxval=lim_fc,
                               dtype=jnp.float32)
    xav = jnp.sqrt(6.0 / (E + E))
    w_b = jax.random.uniform(ks[6], (E, E), minval=-xav, maxval=xav,
                             dtype=jnp.float32)           # xavier_uniform_

    params = {
        "token_embedding": tok_emb,
        "path_embedding": path_emb,
        "w_fc_t": w_fc.T,            # (3E, K), pre-transposed for x @ W
        "a": a_vec,                  # (K, 1)
        "w_fc2_t": w_fc2.T,          # (K, E)
        "b_fc2": b_fc2.reshape(1, E),
        "w_b": w_b,                  # (E, E)
    }

    # --- deterministic example inputs ---
    starts = jax.random.randint(ks[7], (B, C), 0, vocab_size, dtype=jnp.int32)
    ends = jax.random.randint(ks[8], (B, C), 0, vocab_size, dtype=jnp.int32)
    paths = jax.random.randint(ks[9], (B, C), 1, paths_dim + 1, dtype=jnp.int32)
    masks = jnp.ones((B, C), dtype=jnp.float32)   # unused, as in the module

    # x2: ragged docstrings padded in-script to max_len=20 with -1 (constant).
    doc_lens = [13, 20]
    rows = []
    for i, n in enumerate(doc_lens):
        toks = jax.random.randint(jax.random.fold_in(ks[10], i), (n,),
                                  0, vocab_size, dtype=jnp.int32)
        pad = jnp.full((L - n,), -1, dtype=jnp.int32)
        rows.append(jnp.concatenate([toks, pad]))
    encodes = jnp.stack(rows)                     # (B, L)

    # TODO(synk): dropout(p=0.25) in Code2VecEncoder is omitted (eval-mode identity).
    # TODO(synk): compute_dtype=jnp.bfloat16 is the recommended v6e/v7x setting
    #             (halves HBM input traffic); f32 here so the 1e-5 allclose
    #             check stays valid.

    lvec, rvec = code_search_forward(params, starts, paths, ends, masks,
                                     encodes, L)
    jax.block_until_ready((lvec, rvec))

    lref, rref = reference_forward(params, starts, paths, ends, masks,
                                   encodes, L)
    assert lvec.shape == (B, E) and rvec.shape == (B, E)
    assert jnp.allclose(lvec, lref, atol=1e-5, rtol=1e-5)
    assert jnp.allclose(rvec, rref, atol=1e-5, rtol=1e-5)

    print("KERNEL_OK")
</pallas_src>

<mosaic_0001>
module attributes {stable_mosaic.version = 11 : i64} {
  func.func @_fused_kernel(%arg0: i32, %arg1: memref<2x16x96xf32, #tpu.memory_space<vmem>>, %arg2: memref<96x96xf32, #tpu.memory_space<vmem>>, %arg3: memref<1x96xf32, #tpu.memory_space<vmem>>, %arg4: memref<96x32xf32, #tpu.memory_space<vmem>>, %arg5: memref<1x32xf32, #tpu.memory_space<vmem>>, %arg6: memref<2x24x32xf32, #tpu.memory_space<vmem>>, %arg7: memref<32x32xf32, #tpu.memory_space<vmem>>, %arg8: memref<2x128xf32, #tpu.memory_space<vmem>>) attributes {dimension_semantics = [#tpu.dimension_semantics<parallel>], iteration_bounds = array<i64: 1>, scalar_prefetch = 0 : i64, scratch_operands = 0 : i64, tpu.core_type = #tpu.core_type<tc>, window_params = [{transform_indices = @transform_0, window_bounds = array<i64: 2, 16, 96>}, {pipeline_mode = #tpu.pipeline_mode<synchronous>, transform_indices = @transform_1, window_bounds = array<i64: 96, 96>}, {pipeline_mode = #tpu.pipeline_mode<synchronous>, transform_indices = @transform_2, window_bounds = array<i64: 1, 96>}, {pipeline_mode = #tpu.pipeline_mode<synchronous>, transform_indices = @transform_3, window_bounds = array<i64: 96, 32>}, {pipeline_mode = #tpu.pipeline_mode<synchronous>, transform_indices = @transform_4, window_bounds = array<i64: 1, 32>}, {transform_indices = @transform_5, window_bounds = array<i64: 2, 24, 32>}, {pipeline_mode = #tpu.pipeline_mode<synchronous>, transform_indices = @transform_6, window_bounds = array<i64: 32, 32>}, {transform_indices = @transform_7, window_bounds = array<i64: 2, 128>}]} {
    %c0 = arith.constant 0 : index
    %c0_0 = arith.constant 0 : index
    %c0_1 = arith.constant 0 : index
    %0 = vector.load %arg1[%c0, %c0_0, %c0_1] : memref<2x16x96xf32, #tpu.memory_space<vmem>>, vector<2x16x96xf32>
    %1 = vector.shape_cast %0 : vector<2x16x96xf32> to vector<32x96xf32>
    %c0_2 = arith.constant 0 : index
    %c0_3 = arith.constant 0 : index
    %2 = vector.load %arg2[%c0_2, %c0_3] : memref<96x96xf32, #tpu.memory_space<vmem>>, vector<96x96xf32>
    %cst = arith.constant dense<0.000000e+00> : vector<32x96xf32>
    %3 = tpu.matmul %1, %2, %cst {dimension_numbers = #tpu.dot_dimension_numbers<[1], [0], [0], [1], [0, 0, 1, 1], [], []>} : vector<32x96xf32>, vector<96x96xf32>, vector<32x96xf32> -> vector<32x96xf32>
    %4 = math.tanh %3 : vector<32x96xf32>
    %5 = vector.shape_cast %4 : vector<32x96xf32> to vector<2x16x96xf32>
    %c0_4 = arith.constant 0 : index
    %c0_5 = arith.constant 0 : index
    %6 = vector.load %arg3[%c0_4, %c0_5] : memref<1x96xf32, #tpu.memory_space<vmem>>, vector<1x96xf32>
    %7 = vector.shape_cast %6 : vector<1x96xf32> to vector<1x1x96xf32>
    %8 = vector.broadcast %7 : vector<1x1x96xf32> to vector<2x16x96xf32>
    %9 = arith.mulf %5, %8 : vector<2x16x96xf32>
    %cst_6 = arith.constant dense<0.000000e+00> : vector<2x16xf32>
    %10 = vector.multi_reduction <add>, %9, %cst_6 [2] : vector<2x16x96xf32> to vector<2x16xf32>
    %11 = tpu.iota {dimensions = array<i32: 1>} : vector<2x16xi32>
    %c16_i32 = arith.constant 16 : i32
    %12 = vector.broadcast %c16_i32 : i32 to vector<2x16xi32>
    %13 = arith.cmpi slt, %11, %12 : vector<2x16xi32>
    %cst_7 = arith.constant -1.000000e+30 : f32
    %14 = vector.broadcast %cst_7 : f32 to vector<2x16xf32>
    %15 = arith.select %13, %10, %14 : vector<2x16xi1>, vector<2x16xf32>
    %cst_8 = arith.constant dense<0xFF800000> : vector<2xf32>
    %16 = vector.multi_reduction <maximumf>, %15, %cst_8 [1] : vector<2x16xf32> to vector<2xf32>
    %17 = vector.shape_cast %16 : vector<2xf32> to vector<2x1xf32>
    %18 = vector.broadcast %17 : vector<2x1xf32> to vector<2x16xf32>
    %19 = arith.subf %15, %18 : vector<2x16xf32>
    %20 = math.exp %19 : vector<2x16xf32>
    %cst_9 = arith.constant dense<0.000000e+00> : vector<2xf32>
    %21 = vector.multi_reduction <add>, %20, %cst_9 [1] : vector<2x16xf32> to vector<2xf32>
    %22 = vector.shape_cast %21 : vector<2xf32> to vector<2x1xf32>
    %23 = vector.broadcast %22 : vector<2x1xf32> to vector<2x16xf32>
    %24 = arith.divf %20, %23 : vector<2x16xf32>
    %25 = vector.shape_cast %24 : vector<2x16xf32> to vector<2x16x1xf32>
    %26 = vector.broadcast %25 : vector<2x16x1xf32> to vector<2x16x96xf32>
    %27 = arith.mulf %5, %26 : vector<2x16x96xf32>
    %cst_10 = arith.constant dense<0.000000e+00> : vector<2x96xf32>
    %28 = vector.multi_reduction <add>, %27, %cst_10 [1] : vector<2x16x96xf32> to vector<2x96xf32>
    %c0_11 = arith.constant 0 : index
    %c0_12 = arith.constant 0 : index
    %29 = vector.load %arg4[%c0_11, %c0_12] : memref<96x32xf32, #tpu.memory_space<vmem>>, vector<96x32xf32>
    %cst_13 = arith.constant dense<0.000000e+00> : vector<2x32xf32>
    %30 = tpu.matmul %28, %29, %cst_13 {dimension_numbers = #tpu.dot_dimension_numbers<[1], [0], [0], [1], [0, 0, 1, 1], [], []>} : vector<2x96xf32>, vector<96x32xf32>, vector<2x32xf32> -> vector<2x32xf32>
    %c0_14 = arith.constant 0 : index
    %c0_15 = arith.constant 0 : index
    %31 = vector.load %arg5[%c0_14, %c0_15] : memref<1x32xf32, #tpu.memory_space<vmem>>, vector<1x32xf32>
    %32 = vector.broadcast %31 : vector<1x32xf32> to vector<2x32xf32>
    %33 = arith.addf %30, %32 : vector<2x32xf32>
    %c0_16 = arith.constant 0 : index
    %c0_17 = arith.constant 0 : index
    %c0_18 = arith.constant 0 : index
    %34 = vector.load %arg6[%c0_16, %c0_17, %c0_18] : memref<2x24x32xf32, #tpu.memory_space<vmem>>, vector<2x24x32xf32>
    %cst_19 = arith.constant dense<0.000000e+00> : vector<2x32xf32>
    %35 = vector.multi_reduction <add>, %34, %cst_19 [1] : vector<2x24x32xf32> to vector<2x32xf32>
    %cst_20 = arith.constant 2.000000e+01 : f32
    %36 = vector.broadcast %cst_20 : f32 to vector<2x32xf32>
    %37 = arith.divf %35, %36 : vector<2x32xf32>
    %38 = vector.shape_cast %34 : vector<2x24x32xf32> to vector<48x32xf32>
    %c0_21 = arith.constant 0 : index
    %c0_22 = arith.constant 0 : index
    %39 = vector.load %arg7[%c0_21, %c0_22] : memref<32x32xf32, #tpu.memory_space<vmem>>, vector<32x32xf32>
    %cst_23 = arith.constant dense<0.000000e+00> : vector<48x32xf32>
    %40 = tpu.matmul %38, %39, %cst_23 {dimension_numbers = #tpu.dot_dimension_numbers<[1], [0], [0], [1], [0, 0, 1, 1], [], []>} : vector<48x32xf32>, vector<32x32xf32>, vector<48x32xf32> -> vector<48x32xf32>
    %41 = vector.shape_cast %40 : vector<48x32xf32> to vector<2x24x32xf32>
    %42 = vector.shape_cast %37 : vector<2x32xf32> to vector<2x1x32xf32>
    %43 = vector.broadcast %42 : vector<2x1x32xf32> to vector<2x24x32xf32>
    %44 = arith.mulf %41, %43 : vector<2x24x32xf32>
    %cst_24 = arith.constant dense<0.000000e+00> : vector<2x24xf32>
    %45 = vector.multi_reduction <add>, %44, %cst_24 [2] : vector<2x24x32xf32> to vector<2x24xf32>
    %46 = tpu.iota {dimensions = array<i32: 1>} : vector<2x24xi32>
    %c20_i32 = arith.constant 20 : i32
    %47 = vector.broadcast %c20_i32 : i32 to vector<2x24xi32>
    %48 = arith.cmpi slt, %46, %47 : vector<2x24xi32>
    %cst_25 = arith.constant -1.000000e+30 : f32
    %49 = vector.broadcast %cst_25 : f32 to vector<2x24xf32>
    %50 = arith.select %48, %45, %49 : vector<2x24xi1>, vector<2x24xf32>
    %cst_26 = arith.constant dense<0xFF800000> : vector<2xf32>
    %51 = vector.multi_reduction <maximumf>, %50, %cst_26 [1] : vector<2x24xf32> to vector<2xf32>
    %52 = vector.shape_cast %51 : vector<2xf32> to vector<2x1xf32>
    %53 = vector.broadcast %52 : vector<2x1xf32> to vector<2x24xf32>
    %54 = arith.subf %50, %53 : vector<2x24xf32>
    %55 = math.exp %54 : vector<2x24xf32>
    %cst_27 = arith.constant dense<0.000000e+00> : vector<2xf32>
    %56 = vector.multi_reduction <add>, %55, %cst_27 [1] : vector<2x24xf32> to vector<2xf32>
    %57 = vector.shape_cast %56 : vector<2xf32> to vector<2x1xf32>
    %58 = vector.broadcast %57 : vector<2x1xf32> to vector<2x24xf32>
    %59 = arith.divf %55, %58 : vector<2x24xf32>
    %60 = vector.shape_cast %59 : vector<2x24xf32> to vector<2x24x1xf32>
    %61 = vector.broadcast %60 : vector<2x24x1xf32> to vector<2x24x32xf32>
    %62 = arith.mulf %34, %61 : vector<2x24x32xf32>
    %cst_28 = arith.constant dense<0.000000e+00> : vector<2x32xf32>
    %63 = vector.multi_reduction <add>, %62, %cst_28 [1] : vector<2x24x32xf32> to vector<2x32xf32>
    %64 = tpu.concatenate %33, %63 in 1 : vector<2x32xf32>, vector<2x32xf32> -> vector<2x64xf32>
    %cst_29 = arith.constant 0.000000e+00 : f32
    %65 = vector.broadcast %cst_29 : f32 to vector<2x64xf32>
    %66 = tpu.concatenate %64, %65 in 1 : vector<2x64xf32>, vector<2x64xf32> -> vector<2x128xf32>
    %c0_30 = arith.constant 0 : index
    %c0_31 = arith.constant 0 : index
    %67 = vector.load %arg8[%c0_30, %c0_31] : memref<2x128xf32, #tpu.memory_space<vmem>>, vector<2x128xf32>
    tpu.vector_store %arg8[%c0_30, %c0_31], %66 {strides = array<i32>} : memref<2x128xf32, #tpu.memory_space<vmem>>, vector<2x128xf32>,
    return
  }
  func.func @transform_0(%arg0: i32) -> (i32, i32, i32) {
    %c0_i32 = arith.constant 0 : i32
    %c0_i32_0 = arith.constant 0 : i32
    %c0_i32_1 = arith.constant 0 : i32
    return %arg0, %c0_i32, %c0_i32_0 : i32, i32, i32
  }
  func.func @transform_1(%arg0: i32) -> (i32, i32) {
    %c0_i32 = arith.constant 0 : i32
    %c0_i32_0 = arith.constant 0 : i32
    %c0_i32_1 = arith.constant 0 : i32
    return %c0_i32, %c0_i32_0 : i32, i32
  }
  func.func @transform_2(%arg0: i32) -> (i32, i32) {
    %c0_i32 = arith.constant 0 : i32
    %c0_i32_0 = arith.constant 0 : i32
    %c0_i32_1 = arith.constant 0 : i32
    return %c0_i32, %c0_i32_0 : i32, i32
  }
  func.func @transform_3(%arg0: i32) -> (i32, i32) {
    %c0_i32 = arith.constant 0 : i32
    %c0_i32_0 = arith.constant 0 : i32
    %c0_i32_1 = arith.constant 0 : i32
    return %c0_i32, %c0_i32_0 : i32, i32
  }
  func.func @transform_4(%arg0: i32) -> (i32, i32) {
    %c0_i32 = arith.constant 0 : i32
    %c0_i32_0 = arith.constant 0 : i32
    %c0_i32_1 = arith.constant 0 : i32
    return %c0_i32, %c0_i32_0 : i32, i32
  }
  func.func @transform_5(%arg0: i32) -> (i32, i32, i32) {
    %c0_i32 = arith.constant 0 : i32
    %c0_i32_0 = arith.constant 0 : i32
    %c0_i32_1 = arith.constant 0 : i32
    return %arg0, %c0_i32, %c0_i32_0 : i32, i32, i32
  }
  func.func @transform_6(%arg0: i32) -> (i32, i32) {
    %c0_i32 = arith.constant 0 : i32
    %c0_i32_0 = arith.constant 0 : i32
    %c0_i32_1 = arith.constant 0 : i32
    return %c0_i32, %c0_i32_0 : i32, i32
  }
  func.func @transform_7(%arg0: i32) -> (i32, i32) {
    %c0_i32 = arith.constant 0 : i32
    %c0_i32_0 = arith.constant 0 : i32
    return %arg0, %c0_i32 : i32, i32
  }
}

</mosaic_0001>

<llo_original>
// kernel: tpu_custom_call.1
$region0: #{tpu_custom_call.1}
  #allocation0 [shape = 'u32[]', space=smem, size = 0x4, offset = 0x4, fixed_abs, tag = 'smem constant byte address 0x4 - core index']
  #allocation1 [shape = 'u32[144,128]{1,0:T(1,128)}', space=vmem, size = 0x12000, scoped, tag = 'internal scratch']
  %s0 = inlined_call_operand.vmem [shape: f32[2,16,96], index: 0, kind: input, shape index: {}]
  %s1 = inlined_call_operand.vmem [shape: f32[96,96], index: 1, kind: input, shape index: {}]
  %s2 = inlined_call_operand.vmem [shape: f32[1,96], index: 2, kind: input, shape index: {}]
  %s3 = inlined_call_operand.vmem [shape: f32[96,32], index: 3, kind: input, shape index: {}]
  %s4 = inlined_call_operand.vmem [shape: f32[1,32], index: 4, kind: input, shape index: {}]
  %s5 = inlined_call_operand.hbm [shape: f32[2,24,32], index: 5, kind: input, shape index: {}]
  %s6 = inlined_call_operand.hbm [shape: f32[32,32], index: 6, kind: input, shape index: {}]
  %s7 = inlined_call_operand.hbm [shape: f32[2,128], index: 7, kind: output, shape index: {}]
  %s8 = sld [smem:[#allocation0]]
  $region46: #{tpu_custom_call.1} parent=0
    _
  %s10 = ssub.s32 1, %s8
  %s11 = scalar_select 0, %s10, %s8
  $region1: #{tpu_custom_call.1} parent=0
    #allocation2 [shape = 'u8[24576]{0}', space=vmem, size = 0x6000, scoped, tag = 'input window, operand 5, single buffered']
    #allocation3 [shape = 's32[1]{0}', space=sflag, size = 0x4, scoped, tag = 'scoped memory for tpu_custom_call.1']
    #allocation4 [shape = 's32[1]{0}', space=sflag, size = 0x4, scoped, tag = 'scoped memory for tpu_custom_call.1']
    #allocation5 [shape = 'u8[16384]{0}', space=vmem, size = 0x4000, scoped, tag = 'input window, operand 6, single buffered']
    #allocation6 [shape = 's32[1]{0}', space=sflag, size = 0x4, scoped, tag = 'scoped memory for tpu_custom_call.1']
    #allocation7 [shape = 'u8[1024]{0}', space=vmem, size = 0x400, scoped, tag = 'output window, operand 0, single buffered']
    %12 = vsyncpa [#allocation3], 0
    %13 = vsyncpa [#allocation6], 0
    %14 = vsyncpa [#allocation4], 0
    // Predicated region
    $region2: #{tpu_custom_call.1} parent=1 // pred_check
      _
    $region3: #{tpu_custom_call.1} parent=1 // pred_check_branch
      %16 = sbr.rel (0) target = $region5
    $region4: #{tpu_custom_call.1} parent=1 // pred_region
      _
    $region5: #{tpu_custom_call.1} parent=1 // pred_fallthru
      _
    // Predicated region
    $region6: #{tpu_custom_call.1} parent=1 // pred_check
      _
    $region7: #{tpu_custom_call.1} parent=1 // pred_check_branch
      %18 = sbr.rel (0) target = $region9
    $region8: #{tpu_custom_call.1} parent=1 // pred_region
      _
    $region9: #{tpu_custom_call.1} parent=1 // pred_fallthru
      _
    // Predicated region
    $region10: #{tpu_custom_call.1} parent=1 // pred_check
      _
    $region11: #{tpu_custom_call.1} parent=1 // pred_check_branch
      %20 = sbr.rel (0) target = $region13
    $region12: #{tpu_custom_call.1} parent=1 // pred_region
      _
    $region13: #{tpu_custom_call.1} parent=1 // pred_fallthru
      _
    // Predicated region
    $region14: #{tpu_custom_call.1} parent=1 // pred_check
      _
    $region15: #{tpu_custom_call.1} parent=1 // pred_check_branch
      %22 = sbr.rel (0) target = $region17
    $region16: #{tpu_custom_call.1} parent=1 // pred_region
      _
    $region17: #{tpu_custom_call.1} parent=1 // pred_fallthru
      _
    // Predicated region
    $region18: #{tpu_custom_call.1} parent=1 // pred_check
      _
    $region19: #{tpu_custom_call.1} parent=1 // pred_check_branch
      %24 = sbr.rel (0) target = $region21
    $region20: #{tpu_custom_call.1} parent=1 // pred_region
      _
    $region21: #{tpu_custom_call.1} parent=1 // pred_fallthru
      _
    // Predicated region
    $region22: #{tpu_custom_call.1} parent=1 // pred_check
      _
    $region23: #{tpu_custom_call.1} parent=1 // pred_check_branch
      %26 = sbr.rel (0) target = $region25
    $region24: #{tpu_custom_call.1} parent=1 // pred_region
      %s28 = ssub.s32 768, 768
      %29 = vsyncadd [#allocation3], %s28
      %s30 = sshll.u32 [#allocation2], 4
      %s31 = int_to_ptr.vmem [resolvable:$true] %s30
      %36 = dma.hbm_to_vmem [thread:$0]  %s5, 768, %s31, [#allocation3], 128, 128, 8
    $region25: #{tpu_custom_call.1} parent=1 // pred_fallthru
      _
    // Predicated region
    $region26: #{tpu_custom_call.1} parent=1 // pred_check
      _
    $region27: #{tpu_custom_call.1} parent=1 // pred_check_branch
      %38 = sbr.rel (0) target = $region29
    $region28: #{tpu_custom_call.1} parent=1 // pred_region
      %s40 = ssub.s32 512, 512
      %41 = vsyncadd [#allocation6], %s40
      %s42 = sshll.u32 [#allocation5], 4
      %s43 = int_to_ptr.vmem [resolvable:$true] %s42
      %48 = dma.hbm_to_vmem [thread:$0]  %s6, 512, %s43, [#allocation6], 128, 128, 8
    $region29: #{tpu_custom_call.1} parent=1 // pred_fallthru
      _
    // Predicated region
    $region30: #{tpu_custom_call.1} parent=1 // pred_check
      _
    $region31: #{tpu_custom_call.1} parent=1 // pred_check_branch
      %50 = sbr.rel (0) target = $region33
    $region32: #{tpu_custom_call.1} parent=1 // pred_region
      %51 = dma.done [#allocation3], 768
    $region33: #{tpu_custom_call.1} parent=1 // pred_fallthru
      _
    // Predicated region
    $region34: #{tpu_custom_call.1} parent=1 // pred_check
      _
    $region35: #{tpu_custom_call.1} parent=1 // pred_check_branch
      %53 = sbr.rel (0) target = $region37
    $region36: #{tpu_custom_call.1} parent=1 // pred_region
      %54 = dma.done [#allocation6], 512
    $region37: #{tpu_custom_call.1} parent=1 // pred_fallthru
      _
    %v55 = vld [vmem:[%s0] sm:$0xff]
    %v56 = vld [vmem:[%s0 + $0x8] sm:$0xff]
    %v57 = vld [vmem:[%s0 + $0x10] sm:$0xff]
    %v58 = vld [vmem:[%s0 + $0x18] sm:$0xff]
    %v59 = vld [vmem:[%s1] sm:$0xff]
    %v60 = vld [vmem:[%s1 + $0x8] sm:$0xff]
    %v61 = vld [vmem:[%s1 + $0x10] sm:$0xff]
    %v62 = vld [vmem:[%s1 + $0x18] sm:$0xff]
    %v63 = vld [vmem:[%s1 + $0x20] sm:$0xff]
    %v64 = vld [vmem:[%s1 + $0x28] sm:$0xff]
    %v65 = vld [vmem:[%s1 + $0x30] sm:$0xff]
    %v66 = vld [vmem:[%s1 + $0x38] sm:$0xff]
    %v67 = vld [vmem:[%s1 + $0x40] sm:$0xff]
    %v68 = vld [vmem:[%s1 + $0x48] sm:$0xff]
    %v69 = vld [vmem:[%s1 + $0x50] sm:$0xff]
    %v70 = vld [vmem:[%s1 + $0x58] sm:$0xff]
    %vm71 = vcmask 785408
    %v73 = vsel %vm71, %v55, 0
    %v76 = vsel %vm71, %v56, 0
    %v79 = vsel %vm71, %v57, 0
    %v82 = vsel %vm71, %v58, 0
    %84 = vmatprep.subr.mxu0 0.0
    %85 = vmatpush1.msra.mxu0 0.0
    %86 = vmatprep.subr.mxu0 0.0
    %87 = vmatpush1.msra.mxu0 0.0
    %88 = vmatprep.subr.mxu0 0.0
    %89 = vmatpush1.msra.mxu0 0.0
    %90 = vmatprep.subr.mxu0 0.0
    %91 = vmatpush1.msra.mxu0 0.0
    %92 = vmatprep.subr.mxu0 0.0
    %93 = vmatpush1.msra.mxu0 %v70
    %94 = vmatprep.subr.mxu0 0.0
    %95 = vmatpush1.msra.mxu0 %v69
    %96 = vmatprep.subr.mxu0 0.0
    %97 = vmatpush1.msra.mxu0 %v68
    %98 = vmatprep.subr.mxu0 0.0
    %99 = vmatpush1.msra.mxu0 %v67
    %100 = vmatprep.subr.mxu0 0.0
    %101 = vmatpush1.msra.mxu0 %v66
    %102 = vmatprep.subr.mxu0 0.0
    %103 = vmatpush1.msra.mxu0 %v65
    %104 = vmatprep.subr.mxu0 0.0
    %105 = vmatpush1.msra.mxu0 %v64
    %106 = vmatprep.subr.mxu0 0.0
    %107 = vmatpush1.msra.mxu0 %v63
    %108 = vmatprep.subr.mxu0 0.0
    %109 = vmatpush1.msra.mxu0 %v62
    %110 = vmatprep.subr.mxu0 0.0
    %111 = vmatpush1.msra.mxu0 %v61
    %112 = vmatprep.subr.mxu0 0.0
    %113 = vmatpush1.msra.mxu0 %v60
    %114 = vmatprep.subr.mxu0 0.0
    %115 = vmatpush1.msra.mxu0 %v59
    %116 = vmatprep.subr.mxu0 0.0
    %117 = vmatpush2.msra.mxu0 0.0
    %118 = vmatprep.subr.mxu0 0.0
    %119 = vmatpush2.msra.mxu0 0.0
    %120 = vmatprep.subr.mxu0 0.0
    %121 = vmatpush2.msra.mxu0 0.0
    %122 = vmatprep.subr.mxu0 0.0
    %123 = vmatpush2.msra.mxu0 0.0
    %124 = vmatprep.subr.mxu0 0.0
    %125 = vmatpush2.msra.mxu0 0.0
    %126 = vmatprep.subr.mxu0 0.0
    %127 = vmatpush2.msra.mxu0 0.0
    %128 = vmatprep.subr.mxu0 0.0
    %129 = vmatpush2.msra.mxu0 0.0
    %130 = vmatprep.subr.mxu0 0.0
    %131 = vmatpush2.msra.mxu0 0.0
    %132 = vmatprep.subr.mxu0 0.0
    %133 = vmatpush2.msra.mxu0 0.0
    %134 = vmatprep.subr.mxu0 0.0
    %135 = vmatpush2.msra.mxu0 0.0
    %136 = vmatprep.subr.mxu0 0.0
    %137 = vmatpush2.msra.mxu0 0.0
    %138 = vmatprep.subr.mxu0 0.0
    %139 = vmatpush2.msra.mxu0 0.0
    %140 = vmatprep.subr.mxu0 0.0
    %141 = vmatpush2.msra.mxu0 0.0
    %142 = vmatprep.subr.mxu0 0.0
    %143 = vmatpush2.msra.mxu0 0.0
    %144 = vmatprep.subr.mxu0 0.0
    %145 = vmatpush2.msra.mxu0 0.0
    %146 = vmatprep.subr.mxu0 0.0
    %147 = vmatpush2.msra.mxu0 0.0
    %148 = vmatprep.mubr.f32.mxu0 0.0
    %149 = vmatmul.mubr.f32.gmra.mxu0 %v73
    %v150 = vpop.f32.mrf.mxu0
    %v151 = vadd.f32 0.0, %v150
    %v152 = vpop.f32.mrf.mxu0
    %153 = vmatprep.mubr.f32.mxu0 0.0
    %154 = vmatmul.mubr.f32.gmra.mxu0 %v76
    %v155 = vpop.f32.mrf.mxu0
    %v156 = vadd.f32 0.0, %v155
    %v157 = vpop.f32.mrf.mxu0
    %158 = vmatprep.mubr.f32.mxu0 0.0
    %159 = vmatmul.mubr.f32.gmra.mxu0 %v79
    %v160 = vpop.f32.mrf.mxu0
    %v161 = vadd.f32 0.0, %v160
    %v162 = vpop.f32.mrf.mxu0
    %163 = vmatprep.mubr.f32.mxu0 0.0
    %164 = vmatmul.mubr.f32.gmra.mxu0 %v82
    %v165 = vpop.f32.mrf.mxu0
    %v166 = vadd.f32 0.0, %v165
    %v167 = vpop.f32.mrf.mxu0
    %168 = vdwg.mxu0
    %v169 = vtanh.pop %v151
    %v170 = vtanh.pop %v156
    %v171 = vtanh.pop %v161
    %v172 = vtanh.pop %v166
    %v173 = vld [vmem:[%s2] sm:$0x1]
    %v175 = vlaneseq
    %v176 = vshrl.u32 %v175, 7
    %v177 = vsub.s32 0, %v176
    %v178 = vrot.slane %v173, %v177
    %v180 = vmul.f32 %v169, %v178
    %v181 = vmul.f32 %v170, %v178
    %v182 = vmul.f32 %v171, %v178
    %v183 = vmul.f32 %v172, %v178
    %v184 = vsel %vm71, %v180, 0.0
    %185 = vadd.xlane.f32.xlu0 %v184
    %v186 = vpop.xlane.xlu0 %185
    %v187 = vsel %vm71, %v181, 0.0
    %188 = vadd.xlane.f32.xlu0 %v187
    %v189 = vpop.xlane.xlu0 %188
    %v190 = vsel %vm71, %v182, 0.0
    %191 = vadd.xlane.f32.xlu0 %v190
    %v192 = vpop.xlane.xlu0 %191
    %v193 = vsel %vm71, %v183, 0.0
    %194 = vadd.xlane.f32.xlu0 %v193
    %v195 = vpop.xlane.xlu0 %194
    %v196 = vlaneseq
    %v197 = vand.u32 %v196, 127
    %vm198 = vcmp.lt.s32.totalorder %v197, 16
    %v203 = vlaneseq
    %v204 = vshrl.u32 %v203, 7
    %v205 = vsub.s32 %v197, %v204
    %v206 = vrot.slane %v186, %v205
    %v207 = vadd.s32 %v197, 4294967288
    %v208 = vlaneseq
    %v209 = vshrl.u32 %v208, 7
    %v210 = vsub.s32 %v207, %v209
    %v211 = vrot.slane %v189, %v210
    %vm212 = vcmask 130112
    %v213 = vsel %vm212, %v211, %v206
    %v214 = vlaneseq
    %v215 = vshrl.u32 %v214, 7
    %v216 = vsub.s32 %v197, %v215
    %v217 = vrot.slane %v192, %v216
    %v218 = vlaneseq
    %v219 = vshrl.u32 %v218, 7
    %v220 = vsub.s32 %v207, %v219
    %v221 = vrot.slane %v195, %v220
    %v222 = vsel %vm212, %v221, %v217
    %vm223 = vcmask 1041409
    %v224 = vsel %vm223, %v222, %v213
    %v226 = vsel %vm198, %v224, -1e+30
    %vm227 = vcmask 123904
    %v228 = vsel %vm227, %v226, -inf
    %229 = vmax.xlane.f32.xlu0 %v228
    %v230 = vpop.xlane.xlu0 %229
    %v231 = vsub.f32 %v226, %v230
    %v232 = vmul.f32 %v231, 1.442695
    %v233 = vpow.pop %v232
    %v234 = vsel %vm227, %v233, 0.0
    %235 = vadd.xlane.f32.xlu0 %v234
    %v236 = vpop.xlane.xlu0 %235
    %v237 = vrcp.pop %v236
    %v238 = vmul.f32 %v233, %v237
    %v239 = vlaneseq
    %v240 = vshrl.u32 %v239, 7
    %v241 = vsub.s32 0, %v240
    %v242 = vrot.slane %v238, %v241
    %244 = vbcast.lane.b32.xlu0 %v242, 256
    %v245 = vpop.permute.xlu0 %244
    %s247 = sor.u32 256, 8
    %248 = vbcast.lane.b32.xlu0 %v242, %s247
    %v249 = vpop.permute.xlu0 %248
    %v250 = vlaneseq
    %v251 = vshrl.u32 %v250, 7
    %v252 = vsub.s32 1, %v251
    %v253 = vrot.slane %v238, %v252
    %255 = vbcast.lane.b32.xlu0 %v253, 256
    %v256 = vpop.permute.xlu0 %255
    %s258 = sor.u32 256, 8
    %259 = vbcast.lane.b32.xlu0 %v253, %s258
    %v260 = vpop.permute.xlu0 %259
    %v261 = vmul.f32 %v169, %v245
    %v262 = vmul.f32 %v170, %v249
    %v263 = vmul.f32 %v171, %v256
    %v264 = vmul.f32 %v172, %v260
    %v265 = vsel %vm71, %v261, 0.0
    %v266 = vsel %vm71, %v262, 0.0
    %v267 = vadd.f32 %v265, %v266
    %v268 = vrot.slane %v267, 4
    %v269 = vadd.f32 %v267, %v268
    %v270 = vrot.slane %v269, 2
    %v271 = vadd.f32 %v269, %v270
    %v272 = vrot.slane %v271, 1
    %v273 = vadd.f32 %v271, %v272
    %v274 = vsel %vm71, %v263, 0.0
    %v275 = vsel %vm71, %v264, 0.0
    %v276 = vadd.f32 %v274, %v275
    %v277 = vrot.slane %v276, 4
    %v278 = vadd.f32 %v276, %v277
    %v279 = vrot.slane %v278, 2
    %v280 = vadd.f32 %v278, %v279
    %v281 = vrot.slane %v280, 1
    %v282 = vadd.f32 %v280, %v281
    %v283 = vld [vmem:[%s3] sm:$0xff]
    %v284 = vld [vmem:[%s3 + $0x8] sm:$0xff]
    %v285 = vld [vmem:[%s3 + $0x10] sm:$0xff]
    %v286 = vld [vmem:[%s3 + $0x18] sm:$0xff]
    %v287 = vld [vmem:[%s3 + $0x20] sm:$0xff]
    %v288 = vld [vmem:[%s3 + $0x28] sm:$0xff]
    %v289 = vld [vmem:[%s3 + $0x30] sm:$0xff]
    %v290 = vld [vmem:[%s3 + $0x38] sm:$0xff]
    %v291 = vld [vmem:[%s3 + $0x40] sm:$0xff]
    %v292 = vld [vmem:[%s3 + $0x48] sm:$0xff]
    %v293 = vld [vmem:[%s3 + $0x50] sm:$0xff]
    %v294 = vld [vmem:[%s3 + $0x58] sm:$0xff]
    %v295 = vld [vmem:[%s4] sm:$0x1]
    %v297 = vlaneseq
    %v298 = vshrl.u32 %v297, 7
    %v299 = vsub.s32 0, %v298
    %v300 = vrot.slane %v295, %v299
    %v304 = vsel %vm223, %v282, %v273
    %v305 = vsel %vm71, %v304, 0
    %307 = vmatprep.subr.mxu0 0.0
    %308 = vmatpush1.msra.mxu0 0.0
    %309 = vmatprep.subr.mxu0 0.0
    %310 = vmatpush1.msra.mxu0 0.0
    %311 = vmatprep.subr.mxu0 0.0
    %312 = vmatpush1.msra.mxu0 0.0
    %313 = vmatprep.subr.mxu0 0.0
    %314 = vmatpush1.msra.mxu0 0.0
    %315 = vmatprep.subr.mxu0 0.0
    %316 = vmatpush1.msra.mxu0 %v294
    %317 = vmatprep.subr.mxu0 0.0
    %318 = vmatpush1.msra.mxu0 %v293
    %319 = vmatprep.subr.mxu0 0.0
    %320 = vmatpush1.msra.mxu0 %v292
    %321 = vmatprep.subr.mxu0 0.0
    %322 = vmatpush1.msra.mxu0 %v291
    %323 = vmatprep.subr.mxu0 0.0
    %324 = vmatpush1.msra.mxu0 %v290
    %325 = vmatprep.subr.mxu0 0.0
    %326 = vmatpush1.msra.mxu0 %v289
    %327 = vmatprep.subr.mxu0 0.0
    %328 = vmatpush1.msra.mxu0 %v288
    %329 = vmatprep.subr.mxu0 0.0
    %330 = vmatpush1.msra.mxu0 %v287
    %331 = vmatprep.subr.mxu0 0.0
    %332 = vmatpush1.msra.mxu0 %v286
    %333 = vmatprep.subr.mxu0 0.0
    %334 = vmatpush1.msra.mxu0 %v285
    %335 = vmatprep.subr.mxu0 0.0
    %336 = vmatpush1.msra.mxu0 %v284
    %337 = vmatprep.subr.mxu0 0.0
    %338 = vmatpush1.msra.mxu0 %v283
    %339 = vmatprep.subr.mxu0 0.0
    %340 = vmatpush2.msra.mxu0 0.0
    %341 = vmatprep.subr.mxu0 0.0
    %342 = vmatpush2.msra.mxu0 0.0
    %343 = vmatprep.subr.mxu0 0.0
    %344 = vmatpush2.msra.mxu0 0.0
    %345 = vmatprep.subr.mxu0 0.0
    %346 = vmatpush2.msra.mxu0 0.0
    %347 = vmatprep.subr.mxu0 0.0
    %348 = vmatpush2.msra.mxu0 0.0
    %349 = vmatprep.subr.mxu0 0.0
    %350 = vmatpush2.msra.mxu0 0.0
    %351 = vmatprep.subr.mxu0 0.0
    %352 = vmatpush2.msra.mxu0 0.0
    %353 = vmatprep.subr.mxu0 0.0
    %354 = vmatpush2.msra.mxu0 0.0
    %355 = vmatprep.subr.mxu0 0.0
    %356 = vmatpush2.msra.mxu0 0.0
    %357 = vmatprep.subr.mxu0 0.0
    %358 = vmatpush2.msra.mxu0 0.0
    %359 = vmatprep.subr.mxu0 0.0
    %360 = vmatpush2.msra.mxu0 0.0
    %361 = vmatprep.subr.mxu0 0.0
    %362 = vmatpush2.msra.mxu0 0.0
    %363 = vmatprep.subr.mxu0 0.0
    %364 = vmatpush2.msra.mxu0 0.0
    %365 = vmatprep.subr.mxu0 0.0
    %366 = vmatpush2.msra.mxu0 0.0
    %367 = vmatprep.subr.mxu0 0.0
    %368 = vmatpush2.msra.mxu0 0.0
    %369 = vmatprep.subr.mxu0 0.0
    %370 = vmatpush2.msra.mxu0 0.0
    %371 = vmatprep.mubr.f32.mxu0 0.0
    %372 = vmatmul.mubr.f32.gmra.mxu0 %v305
    %v373 = vpop.f32.mrf.mxu0
    %v374 = vadd.f32 %v300, %v373
    %v375 = vpop.f32.mrf.mxu0
    %376 = vdwg.mxu0
    %v377 = vld [vmem:[#allocation2] sm:$0xff]
    %v378 = vld [vmem:[#allocation2 + $0x8] sm:$0xff]
    %v379 = vld [vmem:[#allocation2 + $0x10] sm:$0xff]
    %v380 = vld [vmem:[#allocation2 + $0x18] sm:$0xff]
    %v381 = vld [vmem:[#allocation2 + $0x20] sm:$0xff]
    %v382 = vld [vmem:[#allocation2 + $0x28] sm:$0xff]
    %vm383 = vcmask 261120
    %v384 = vsel %vm383, %v377, 0.0
    %v385 = vsel %vm383, %v378, 0.0
    %v386 = vadd.f32 %v384, %v385
    %v387 = vsel %vm383, %v379, 0.0
    %v388 = vadd.f32 %v386, %v387
    %v389 = vrot.slane %v388, 4
    %v390 = vadd.f32 %v388, %v389
    %v391 = vrot.slane %v390, 2
    %v392 = vadd.f32 %v390, %v391
    %v393 = vrot.slane %v392, 1
    %v394 = vadd.f32 %v392, %v393
    %v395 = vsel %vm383, %v380, 0.0
    %v396 = vsel %vm383, %v381, 0.0
    %v397 = vadd.f32 %v395, %v396
    %v398 = vsel %vm383, %v382, 0.0
    %v399 = vadd.f32 %v397, %v398
    %v400 = vrot.slane %v399, 4
    %v401 = vadd.f32 %v399, %v400
    %v402 = vrot.slane %v401, 2
    %v403 = vadd.f32 %v401, %v402
    %v404 = vrot.slane %v403, 1
    %v405 = vadd.f32 %v403, %v404
    %v406 = vrcp.pop 20.0
    %v407 = vmul.f32 %v394, %v406
    %v408 = vmul.f32 %v405, %v406
    %v409 = vld [vmem:[#allocation5] sm:$0xff]
    %v410 = vld [vmem:[#allocation5 + $0x8] sm:$0xff]
    %v411 = vld [vmem:[#allocation5 + $0x10] sm:$0xff]
    %v412 = vld [vmem:[#allocation5 + $0x18] sm:$0xff]
    %v414 = vsel %vm383, %v377, 0
    %v417 = vsel %vm383, %v378, 0
    %v420 = vsel %vm383, %v379, 0
    %v423 = vsel %vm383, %v380, 0
    %v426 = vsel %vm383, %v381, 0
    %v429 = vsel %vm383, %v382, 0
    %431 = vmatprep.subr.mxu0 0.0
    %432 = vmatpush1.msra.mxu0 0.0
    %433 = vmatprep.subr.mxu0 0.0
    %434 = vmatpush1.msra.mxu0 0.0
    %435 = vmatprep.subr.mxu0 0.0
    %436 = vmatpush1.msra.mxu0 0.0
    %437 = vmatprep.subr.mxu0 0.0
    %438 = vmatpush1.msra.mxu0 0.0
    %439 = vmatprep.subr.mxu0 0.0
    %440 = vmatpush1.msra.mxu0 0.0
    %441 = vmatprep.subr.mxu0 0.0
    %442 = vmatpush1.msra.mxu0 0.0
    %443 = vmatprep.subr.mxu0 0.0
    %444 = vmatpush1.msra.mxu0 0.0
    %445 = vmatprep.subr.mxu0 0.0
    %446 = vmatpush1.msra.mxu0 0.0
    %447 = vmatprep.subr.mxu0 0.0
    %448 = vmatpush1.msra.mxu0 0.0
    %449 = vmatprep.subr.mxu0 0.0
    %450 = vmatpush1.msra.mxu0 0.0
    %451 = vmatprep.subr.mxu0 0.0
    %452 = vmatpush1.msra.mxu0 0.0
    %453 = vmatprep.subr.mxu0 0.0
    %454 = vmatpush1.msra.mxu0 0.0
    %455 = vmatprep.subr.mxu0 0.0
    %456 = vmatpush1.msra.mxu0 %v412
    %457 = vmatprep.subr.mxu0 0.0
    %458 = vmatpush1.msra.mxu0 %v411
    %459 = vmatprep.subr.mxu0 0.0
    %460 = vmatpush1.msra.mxu0 %v410
    %461 = vmatprep.subr.mxu0 0.0
    %462 = vmatpush1.msra.mxu0 %v409
    %463 = vmatprep.subr.mxu0 0.0
    %464 = vmatpush2.msra.mxu0 0.0
    %465 = vmatprep.subr.mxu0 0.0
    %466 = vmatpush2.msra.mxu0 0.0
    %467 = vmatprep.subr.mxu0 0.0
    %468 = vmatpush2.msra.mxu0 0.0
    %469 = vmatprep.subr.mxu0 0.0
    %470 = vmatpush2.msra.mxu0 0.0
    %471 = vmatprep.subr.mxu0 0.0
    %472 = vmatpush2.msra.mxu0 0.0
    %473 = vmatprep.subr.mxu0 0.0
    %474 = vmatpush2.msra.mxu0 0.0
    %475 = vmatprep.subr.mxu0 0.0
    %476 = vmatpush2.msra.mxu0 0.0
    %477 = vmatprep.subr.mxu0 0.0
    %478 = vmatpush2.msra.mxu0 0.0
    %479 = vmatprep.subr.mxu0 0.0
    %480 = vmatpush2.msra.mxu0 0.0
    %481 = vmatprep.subr.mxu0 0.0
    %482 = vmatpush2.msra.mxu0 0.0
    %483 = vmatprep.subr.mxu0 0.0
    %484 = vmatpush2.msra.mxu0 0.0
    %485 = vmatprep.subr.mxu0 0.0
    %486 = vmatpush2.msra.mxu0 0.0
    %487 = vmatprep.subr.mxu0 0.0
    %488 = vmatpush2.msra.mxu0 0.0
    %489 = vmatprep.subr.mxu0 0.0
    %490 = vmatpush2.msra.mxu0 0.0
    %491 = vmatprep.subr.mxu0 0.0
    %492 = vmatpush2.msra.mxu0 0.0
    %493 = vmatprep.subr.mxu0 0.0
    %494 = vmatpush2.msra.mxu0 0.0
    %495 = vmatprep.mubr.f32.mxu0 0.0
    %496 = vmatmul.mubr.f32.gmra.mxu0 %v414
    %v497 = vpop.f32.mrf.mxu0
    %v498 = vadd.f32 0.0, %v497
    %v499 = vpop.f32.mrf.mxu0
    %500 = vmatprep.mubr.f32.mxu0 0.0
    %501 = vmatmul.mubr.f32.gmra.mxu0 %v417
    %v502 = vpop.f32.mrf.mxu0
    %v503 = vadd.f32 0.0, %v502
    %v504 = vpop.f32.mrf.mxu0
    %505 = vmatprep.mubr.f32.mxu0 0.0
    %506 = vmatmul.mubr.f32.gmra.mxu0 %v420
    %v507 = vpop.f32.mrf.mxu0
    %v508 = vadd.f32 0.0, %v507
    %v509 = vpop.f32.mrf.mxu0
    %510 = vmatprep.mubr.f32.mxu0 0.0
    %511 = vmatmul.mubr.f32.gmra.mxu0 %v423
    %v512 = vpop.f32.mrf.mxu0
    %v513 = vadd.f32 0.0, %v512
    %v514 = vpop.f32.mrf.mxu0
    %515 = vmatprep.mubr.f32.mxu0 0.0
    %516 = vmatmul.mubr.f32.gmra.mxu0 %v426
    %v517 = vpop.f32.mrf.mxu0
    %v518 = vadd.f32 0.0, %v517
    %v519 = vpop.f32.mrf.mxu0
    %520 = vmatprep.mubr.f32.mxu0 0.0
    %521 = vmatmul.mubr.f32.gmra.mxu0 %v429
    %v522 = vpop.f32.mrf.mxu0
    %v523 = vadd.f32 0.0, %v522
    %v524 = vpop.f32.mrf.mxu0
    %525 = vdwg.mxu0
    %v526 = vmul.f32 %v498, %v407
    %v527 = vmul.f32 %v503, %v407
    %v528 = vmul.f32 %v508, %v407
    %v529 = vmul.f32 %v513, %v408
    %v530 = vmul.f32 %v518, %v408
    %v531 = vmul.f32 %v523, %v408
    %v532 = vsel %vm383, %v526, 0.0
    %533 = vadd.xlane.f32.xlu0 %v532
    %v534 = vpop.xlane.xlu0 %533
    %v535 = vsel %vm383, %v527, 0.0
    %536 = vadd.xlane.f32.xlu0 %v535
    %v537 = vpop.xlane.xlu0 %536
    %v538 = vsel %vm383, %v528, 0.0
    %539 = vadd.xlane.f32.xlu0 %v538
    %v540 = vpop.xlane.xlu0 %539
    %v541 = vsel %vm383, %v529, 0.0
    %542 = vadd.xlane.f32.xlu0 %v541
    %v543 = vpop.xlane.xlu0 %542
    %v544 = vsel %vm383, %v530, 0.0
    %545 = vadd.xlane.f32.xlu0 %v544
    %v546 = vpop.xlane.xlu0 %545
    %v547 = vsel %vm383, %v531, 0.0
    %548 = vadd.xlane.f32.xlu0 %v547
    %v549 = vpop.xlane.xlu0 %548
    %vm550 = vcmp.lt.s32.totalorder %v197, 20
    %v557 = vlaneseq
    %v558 = vshrl.u32 %v557, 7
    %v559 = vsub.s32 %v197, %v558
    %v560 = vrot.slane %v534, %v559
    %v561 = vlaneseq
    %v562 = vshrl.u32 %v561, 7
    %v563 = vsub.s32 %v207, %v562
    %v564 = vrot.slane %v537, %v563
    %v565 = vsel %vm212, %v564, %v560
    %v566 = vadd.s32 %v197, 4294967280
    %v567 = vlaneseq
    %v568 = vshrl.u32 %v567, 7
    %v569 = vsub.s32 %v566, %v568
    %v570 = vrot.slane %v540, %v569
    %vm571 = vcmask 195712
    %v572 = vsel %vm571, %v570, %v565
    %v573 = vlaneseq
    %v574 = vshrl.u32 %v573, 7
    %v575 = vsub.s32 %v197, %v574
    %v576 = vrot.slane %v543, %v575
    %v577 = vlaneseq
    %v578 = vshrl.u32 %v577, 7
    %v579 = vsub.s32 %v207, %v578
    %v580 = vrot.slane %v546, %v579
    %v581 = vsel %vm212, %v580, %v576
    %v582 = vlaneseq
    %v583 = vshrl.u32 %v582, 7
    %v584 = vsub.s32 %v566, %v583
    %v585 = vrot.slane %v549, %v584
    %v586 = vsel %vm571, %v585, %v581
    %v587 = vsel %vm223, %v586, %v572
    %v589 = vsel %vm550, %v587, -1e+30
    %vm590 = vcmask 189440
    %v591 = vsel %vm590, %v589, -inf
    %592 = vmax.xlane.f32.xlu0 %v591
    %v593 = vpop.xlane.xlu0 %592
    %v594 = vsub.f32 %v589, %v593
    %v595 = vmul.f32 %v594, 1.442695
    %v596 = vpow.pop %v595
    %v597 = vsel %vm590, %v596, 0.0
    %598 = vadd.xlane.f32.xlu0 %v597
    %v599 = vpop.xlane.xlu0 %598
    %v600 = vrcp.pop %v599
    %v601 = vmul.f32 %v596, %v600
    %v602 = vlaneseq
    %v603 = vshrl.u32 %v602, 7
    %v604 = vsub.s32 0, %v603
    %v605 = vrot.slane %v601, %v604
    %607 = vbcast.lane.b32.xlu0 %v605, 256
    %v608 = vpop.permute.xlu0 %607
    %s610 = sor.u32 256, 8
    %611 = vbcast.lane.b32.xlu0 %v605, %s610
    %v612 = vpop.permute.xlu0 %611
    %s614 = sor.u32 256, 16
    %615 = vbcast.lane.b32.xlu0 %v605, %s614
    %v616 = vpop.permute.xlu0 %615
    %v617 = vlaneseq
    %v618 = vshrl.u32 %v617, 7
    %v619 = vsub.s32 1, %v618
    %v620 = vrot.slane %v601, %v619
    %622 = vbcast.lane.b32.xlu0 %v620, 256
    %v623 = vpop.permute.xlu0 %622
    %s625 = sor.u32 256, 8
    %626 = vbcast.lane.b32.xlu0 %v620, %s625
    %v627 = vpop.permute.xlu0 %626
    %s629 = sor.u32 256, 16
    %630 = vbcast.lane.b32.xlu0 %v620, %s629
    %v631 = vpop.permute.xlu0 %630
    %v632 = vmul.f32 %v377, %v608
    %v633 = vmul.f32 %v378, %v612
    %v634 = vmul.f32 %v379, %v616
    %v635 = vmul.f32 %v380, %v623
    %v636 = vmul.f32 %v381, %v627
    %v637 = vmul.f32 %v382, %v631
    %v638 = vsel %vm383, %v632, 0.0
    %v639 = vsel %vm383, %v633, 0.0
    %v640 = vadd.f32 %v638, %v639
    %v641 = vsel %vm383, %v634, 0.0
    %v642 = vadd.f32 %v640, %v641
    %v643 = vrot.slane %v642, 4
    %v644 = vadd.f32 %v642, %v643
    %v645 = vrot.slane %v644, 2
    %v646 = vadd.f32 %v644, %v645
    %v647 = vrot.slane %v646, 1
    %v648 = vadd.f32 %v646, %v647
    %v649 = vsel %vm383, %v635, 0.0
    %v650 = vsel %vm383, %v636, 0.0
    %v651 = vadd.f32 %v649, %v650
    %v652 = vsel %vm383, %v637, 0.0
    %v653 = vadd.f32 %v651, %v652
    %v654 = vrot.slane %v653, 4
    %v655 = vadd.f32 %v653, %v654
    %v656 = vrot.slane %v655, 2
    %v657 = vadd.f32 %v655, %v656
    %v658 = vrot.slane %v657, 1
    %v659 = vadd.f32 %v657, %v658
    %v662 = vsel %vm223, %v659, %v648
    %663 = vrot.lane.b32.xlu0 %v662, 32
    %v664 = vpop.permute.xlu0 %663
    %v666 = vsel %vm383, %v374, %v664
    %vm667 = vcmask 523264
    %v668 = vsel %vm667, %v666, 0.0
    %669 = vst [vmem:[#allocation7] sm:$0x3] %v668
    // Predicated region
    $region38: #{tpu_custom_call.1} parent=1 // pred_check
      _
    $region39: #{tpu_custom_call.1} parent=1 // pred_check_branch
      %671 = sbr.rel (0) target = $region41
    $region40: #{tpu_custom_call.1} parent=1 // pred_region
      %s673 = ssub.s32 32, 32
      %674 = vsyncadd [#allocation4], %s673
      %s676 = sshll.u32 [#allocation7], 4
      %s677 = int_to_ptr.vmem [resolvable:$true] %s676
      %679 = dma.vmem_to_hbm [thread:$0]  %s677, 32, %s7, [#allocation4]
    $region41: #{tpu_custom_call.1} parent=1 // pred_fallthru
      _
    // Predicated region
    $region42: #{tpu_custom_call.1} parent=1 // pred_check
      _
    $region43: #{tpu_custom_call.1} parent=1 // pred_check_branch
      %681 = sbr.rel (0) target = $region45
    $region44: #{tpu_custom_call.1} parent=1 // pred_region
      %682 = dma.done [#allocation4], 32
    $region45: #{tpu_custom_call.1} parent=1 // pred_fallthru
      _
    %683 = vsyncpa [#allocation3], 1
    %684 = vsyncpa [#allocation6], 1
    %685 = vsyncpa [#allocation4], 1

</llo_original>
